<compile_context>
chip_gen: v5e
topology: v5e:2x2
jax: 0.10.0
libtpu: 0.0.40
codegen_flags: <defaults>
</compile_context>

<pallas_src>
import math
from functools import partial

import jax
import jax.numpy as jnp
from jax.experimental import pallas as pl
from jax.experimental.pallas import tpu as pltpu


def _head_kernel(x_ref, w_ref, b_ref, o_ref, *, gblk, dout):
    # x_ref: (Gblk, B, Din)      bf16   per-step block
    # w_ref: (Gblk, Din, Dout)   bf16   per-step block
    # b_ref: (Gpad, Dout)        f32    full array, VMEM-resident across grid
    # o_ref: (1, B, Gblk*Dout)          lane-dense output slab
    start = pl.multiple_of(pl.program_id(0) * gblk, gblk)
    b_blk = b_ref[pl.ds(start, gblk), :]                 # (Gblk, Dout) f32

    # Static small unroll over the groups in this block; each dot is an MXU
    # matmul with f32 accumulation (MXU cycles are free filler here).
    for g in range(gblk):
        acc = jnp.dot(x_ref[g], w_ref[g],
                      preferred_element_type=jnp.float32)    # (B, Dout) f32
        acc = acc + b_blk[g][None, :]                        # bias add in f32
        o_ref[0, :, g * dout:(g + 1) * dout] = acc.astype(o_ref.dtype)


def _ceil_to(a, m):
    return (a + m - 1) // m * m


def vectorized_linear_head(x, weight, bias, *, gblk=8):
    """x: (E, H, B, Din); weight: (E, H, Din, Dout); bias: (E, H, 1, Dout)."""
    E, H, B, Din = x.shape
    Dout = weight.shape[-1]
    G = E * H

    nb = pl.cdiv(G, gblk)
    Gpad = nb * gblk
    pad = Gpad - G

    # Flatten groups; stream activations/weights as bf16, keep bias in f32.
    x_f = x.reshape(G, B, Din).astype(jnp.bfloat16)
    w_f = weight.reshape(G, Din, Dout).astype(jnp.bfloat16)
    b_f = bias.reshape(G, Dout).astype(jnp.float32)
    if pad:
        x_f = jnp.pad(x_f, ((0, pad), (0, 0), (0, 0)))
        w_f = jnp.pad(w_f, ((0, pad), (0, 0), (0, 0)))
        b_f = jnp.pad(b_f, ((0, pad), (0, 0)))

    out_dtype = x.dtype
    lane_out = gblk * Dout

    # Conservative padded-tile VMEM estimate (double-buffered blocks + bias),
    # used to set an explicit scoped-VMEM limit (budgeted for v7x's 64 MiB).
    x_blk = gblk * _ceil_to(B, 16) * _ceil_to(Din, 128) * 2
    w_blk = gblk * _ceil_to(Din, 16) * _ceil_to(Dout, 128) * 2
    o_blk = _ceil_to(B, 8) * _ceil_to(lane_out, 128) * 4
    b_all = _ceil_to(Gpad, 8) * _ceil_to(Dout, 128) * 4
    est = 2 * (x_blk + w_blk + o_blk) + 2 * b_all
    vmem_limit = int(min(max(4 * est, 32 * 1024 * 1024), 48 * 1024 * 1024))

    out_f = pl.pallas_call(
        partial(_head_kernel, gblk=gblk, dout=Dout),
        out_shape=jax.ShapeDtypeStruct((nb, B, lane_out), out_dtype),
        grid_spec=pltpu.PrefetchScalarGridSpec(
            num_scalar_prefetch=0,
            grid=(nb,),
            in_specs=[
                pl.BlockSpec((gblk, B, Din), lambda g: (g, 0, 0)),
                pl.BlockSpec((gblk, Din, Dout), lambda g: (g, 0, 0)),
                # Full bias, constant index_map -> fetched once, stays in VMEM.
                pl.BlockSpec((Gpad, Dout), lambda g: (0, 0)),
            ],
            out_specs=pl.BlockSpec((1, B, lane_out), lambda g: (g, 0, 0)),
        ),
        compiler_params=pltpu.CompilerParams(
            dimension_semantics=("parallel",),
            vmem_limit_bytes=vmem_limit,
        ),
    )(x_f, w_f, b_f)

    # Un-interleave the lane-dense slab back to (E, H, B, Dout).
    out = out_f.reshape(nb, B, gblk, Dout)
    out = jnp.transpose(out, (0, 2, 1, 3)).reshape(Gpad, B, Dout)
    return out[:G].reshape(E, H, B, Dout)


if __name__ == "__main__":
    # Small, forward-consistent shapes.
    E, H, B = 2, 3, 8          # ensemble_size, num_heads, batch
    Din, Dout = 32, 16         # in_features, out_features

    key = jax.random.PRNGKey(0)
    k_x, k_w, k_b = jax.random.split(key, 3)

    # Deterministic init mirroring reset_parameters(): U(-stdv, stdv).
    stdv = 1.0 / math.sqrt(Din)
    weight = jax.random.uniform(k_w, (E, H, Din, Dout), jnp.float32, -stdv, stdv)
    bias = jax.random.uniform(k_b, (E, H, 1, Dout), jnp.float32, -stdv, stdv)
    x = jax.random.normal(k_x, (E, H, B, Din), jnp.float32)

    out = vectorized_linear_head(x, weight, bias)
    out = jax.block_until_ready(out)

    # Reference check (plain JAX, f32). bf16 streaming of x/weight with f32
    # accumulation -> loosened tolerance.
    ref = jnp.einsum("ehbi,ehio->ehbo", x, weight) + bias
    assert out.shape == (E, H, B, Dout)
    assert jnp.allclose(out, ref, atol=3e-2, rtol=3e-2), \
        float(jnp.max(jnp.abs(out - ref)))

    print("KERNEL_OK")
</pallas_src>

<mosaic_0001>
module attributes {stable_mosaic.version = 11 : i64} {
  func.func @_head_kernel(%arg0: i32, %arg1: memref<8x8x32xbf16, #tpu.memory_space<vmem>>, %arg2: memref<8x32x16xbf16, #tpu.memory_space<vmem>>, %arg3: memref<8x16xf32, #tpu.memory_space<vmem>>, %arg4: memref<1x8x128xf32, #tpu.memory_space<vmem>>) attributes {dimension_semantics = [#tpu.dimension_semantics<parallel>], iteration_bounds = array<i64: 1>, scalar_prefetch = 0 : i64, scratch_operands = 0 : i64, tpu.core_type = #tpu.core_type<tc>, window_params = [{transform_indices = @transform_0, window_bounds = array<i64: 8, 8, 32>}, {transform_indices = @transform_1, window_bounds = array<i64: 8, 32, 16>}, {pipeline_mode = #tpu.pipeline_mode<synchronous>, transform_indices = @transform_2, window_bounds = array<i64: 8, 16>}, {transform_indices = @transform_3, window_bounds = array<i64: 1, 8, 128>}]} {
    %c8_i32 = arith.constant 8 : i32
    %0 = arith.muli %arg0, %c8_i32 : i32
    %1 = tpu.assume_multiple %0, 8 : i32
    %2 = arith.index_cast %1 : i32 to index
    %c0 = arith.constant 0 : index
    %3 = vector.load %arg3[%2, %c0] : memref<8x16xf32, #tpu.memory_space<vmem>>, vector<8x16xf32>
    %c0_0 = arith.constant 0 : index
    %c0_1 = arith.constant 0 : index
    %c0_2 = arith.constant 0 : index
    %4 = vector.load %arg1[%c0_0, %c0_1, %c0_2] : memref<8x8x32xbf16, #tpu.memory_space<vmem>>, vector<1x8x32xbf16>
    %5 = vector.shape_cast %4 : vector<1x8x32xbf16> to vector<8x32xbf16>
    %c0_3 = arith.constant 0 : index
    %c0_4 = arith.constant 0 : index
    %c0_5 = arith.constant 0 : index
    %6 = vector.load %arg2[%c0_3, %c0_4, %c0_5] : memref<8x32x16xbf16, #tpu.memory_space<vmem>>, vector<1x32x16xbf16>
    %7 = vector.shape_cast %6 : vector<1x32x16xbf16> to vector<32x16xbf16>
    %cst = arith.constant dense<0.000000e+00> : vector<8x16xf32>
    %8 = tpu.matmul %5, %7, %cst {dimension_numbers = #tpu.dot_dimension_numbers<[1], [0], [0], [1], [0, 0, 1, 1], [], []>} : vector<8x32xbf16>, vector<32x16xbf16>, vector<8x16xf32> -> vector<8x16xf32>
    %9 = vector.extract_strided_slice %3 {offsets = [0, 0], sizes = [1, 16], strides = [1, 1]} : vector<8x16xf32> to vector<1x16xf32>
    %10 = vector.shape_cast %9 : vector<1x16xf32> to vector<16xf32>
    %11 = vector.shape_cast %10 : vector<16xf32> to vector<1x16xf32>
    %12 = vector.broadcast %11 : vector<1x16xf32> to vector<8x16xf32>
    %13 = arith.addf %8, %12 : vector<8x16xf32>
    %c0_6 = arith.constant 0 : index
    %c0_7 = arith.constant 0 : index
    %c0_8 = arith.constant 0 : index
    %14 = vector.load %arg4[%c0_6, %c0_7, %c0_8] : memref<1x8x128xf32, #tpu.memory_space<vmem>>, vector<1x8x16xf32>
    %15 = vector.shape_cast %14 : vector<1x8x16xf32> to vector<8x16xf32>
    %16 = vector.shape_cast %13 : vector<8x16xf32> to vector<1x8x16xf32>
    tpu.vector_store %arg4[%c0_6, %c0_7, %c0_8], %16 {strides = array<i32>} : memref<1x8x128xf32, #tpu.memory_space<vmem>>, vector<1x8x16xf32>,
    %c1 = arith.constant 1 : index
    %c0_9 = arith.constant 0 : index
    %c0_10 = arith.constant 0 : index
    %17 = vector.load %arg1[%c1, %c0_9, %c0_10] : memref<8x8x32xbf16, #tpu.memory_space<vmem>>, vector<1x8x32xbf16>
    %18 = vector.shape_cast %17 : vector<1x8x32xbf16> to vector<8x32xbf16>
    %c1_11 = arith.constant 1 : index
    %c0_12 = arith.constant 0 : index
    %c0_13 = arith.constant 0 : index
    %19 = vector.load %arg2[%c1_11, %c0_12, %c0_13] : memref<8x32x16xbf16, #tpu.memory_space<vmem>>, vector<1x32x16xbf16>
    %20 = vector.shape_cast %19 : vector<1x32x16xbf16> to vector<32x16xbf16>
    %cst_14 = arith.constant dense<0.000000e+00> : vector<8x16xf32>
    %21 = tpu.matmul %18, %20, %cst_14 {dimension_numbers = #tpu.dot_dimension_numbers<[1], [0], [0], [1], [0, 0, 1, 1], [], []>} : vector<8x32xbf16>, vector<32x16xbf16>, vector<8x16xf32> -> vector<8x16xf32>
    %22 = vector.extract_strided_slice %3 {offsets = [1, 0], sizes = [1, 16], strides = [1, 1]} : vector<8x16xf32> to vector<1x16xf32>
    %23 = vector.shape_cast %22 : vector<1x16xf32> to vector<16xf32>
    %24 = vector.shape_cast %23 : vector<16xf32> to vector<1x16xf32>
    %25 = vector.broadcast %24 : vector<1x16xf32> to vector<8x16xf32>
    %26 = arith.addf %21, %25 : vector<8x16xf32>
    %c0_15 = arith.constant 0 : index
    %c0_16 = arith.constant 0 : index
    %c16 = arith.constant 16 : index
    %27 = vector.load %arg4[%c0_15, %c0_16, %c16] : memref<1x8x128xf32, #tpu.memory_space<vmem>>, vector<1x8x16xf32>
    %28 = vector.shape_cast %27 : vector<1x8x16xf32> to vector<8x16xf32>
    %29 = vector.shape_cast %26 : vector<8x16xf32> to vector<1x8x16xf32>
    tpu.vector_store %arg4[%c0_15, %c0_16, %c16], %29 {strides = array<i32>} : memref<1x8x128xf32, #tpu.memory_space<vmem>>, vector<1x8x16xf32>,
    %c2 = arith.constant 2 : index
    %c0_17 = arith.constant 0 : index
    %c0_18 = arith.constant 0 : index
    %30 = vector.load %arg1[%c2, %c0_17, %c0_18] : memref<8x8x32xbf16, #tpu.memory_space<vmem>>, vector<1x8x32xbf16>
    %31 = vector.shape_cast %30 : vector<1x8x32xbf16> to vector<8x32xbf16>
    %c2_19 = arith.constant 2 : index
    %c0_20 = arith.constant 0 : index
    %c0_21 = arith.constant 0 : index
    %32 = vector.load %arg2[%c2_19, %c0_20, %c0_21] : memref<8x32x16xbf16, #tpu.memory_space<vmem>>, vector<1x32x16xbf16>
    %33 = vector.shape_cast %32 : vector<1x32x16xbf16> to vector<32x16xbf16>
    %cst_22 = arith.constant dense<0.000000e+00> : vector<8x16xf32>
    %34 = tpu.matmul %31, %33, %cst_22 {dimension_numbers = #tpu.dot_dimension_numbers<[1], [0], [0], [1], [0, 0, 1, 1], [], []>} : vector<8x32xbf16>, vector<32x16xbf16>, vector<8x16xf32> -> vector<8x16xf32>
    %35 = vector.extract_strided_slice %3 {offsets = [2, 0], sizes = [1, 16], strides = [1, 1]} : vector<8x16xf32> to vector<1x16xf32>
    %36 = vector.shape_cast %35 : vector<1x16xf32> to vector<16xf32>
    %37 = vector.shape_cast %36 : vector<16xf32> to vector<1x16xf32>
    %38 = vector.broadcast %37 : vector<1x16xf32> to vector<8x16xf32>
    %39 = arith.addf %34, %38 : vector<8x16xf32>
    %c0_23 = arith.constant 0 : index
    %c0_24 = arith.constant 0 : index
    %c32 = arith.constant 32 : index
    %40 = vector.load %arg4[%c0_23, %c0_24, %c32] : memref<1x8x128xf32, #tpu.memory_space<vmem>>, vector<1x8x16xf32>
    %41 = vector.shape_cast %40 : vector<1x8x16xf32> to vector<8x16xf32>
    %42 = vector.shape_cast %39 : vector<8x16xf32> to vector<1x8x16xf32>
    tpu.vector_store %arg4[%c0_23, %c0_24, %c32], %42 {strides = array<i32>} : memref<1x8x128xf32, #tpu.memory_space<vmem>>, vector<1x8x16xf32>,
    %c3 = arith.constant 3 : index
    %c0_25 = arith.constant 0 : index
    %c0_26 = arith.constant 0 : index
    %43 = vector.load %arg1[%c3, %c0_25, %c0_26] : memref<8x8x32xbf16, #tpu.memory_space<vmem>>, vector<1x8x32xbf16>
    %44 = vector.shape_cast %43 : vector<1x8x32xbf16> to vector<8x32xbf16>
    %c3_27 = arith.constant 3 : index
    %c0_28 = arith.constant 0 : index
    %c0_29 = arith.constant 0 : index
    %45 = vector.load %arg2[%c3_27, %c0_28, %c0_29] : memref<8x32x16xbf16, #tpu.memory_space<vmem>>, vector<1x32x16xbf16>
    %46 = vector.shape_cast %45 : vector<1x32x16xbf16> to vector<32x16xbf16>
    %cst_30 = arith.constant dense<0.000000e+00> : vector<8x16xf32>
    %47 = tpu.matmul %44, %46, %cst_30 {dimension_numbers = #tpu.dot_dimension_numbers<[1], [0], [0], [1], [0, 0, 1, 1], [], []>} : vector<8x32xbf16>, vector<32x16xbf16>, vector<8x16xf32> -> vector<8x16xf32>
    %48 = vector.extract_strided_slice %3 {offsets = [3, 0], sizes = [1, 16], strides = [1, 1]} : vector<8x16xf32> to vector<1x16xf32>
    %49 = vector.shape_cast %48 : vector<1x16xf32> to vector<16xf32>
    %50 = vector.shape_cast %49 : vector<16xf32> to vector<1x16xf32>
    %51 = vector.broadcast %50 : vector<1x16xf32> to vector<8x16xf32>
    %52 = arith.addf %47, %51 : vector<8x16xf32>
    %c0_31 = arith.constant 0 : index
    %c0_32 = arith.constant 0 : index
    %c48 = arith.constant 48 : index
    %53 = vector.load %arg4[%c0_31, %c0_32, %c48] : memref<1x8x128xf32, #tpu.memory_space<vmem>>, vector<1x8x16xf32>
    %54 = vector.shape_cast %53 : vector<1x8x16xf32> to vector<8x16xf32>
    %55 = vector.shape_cast %52 : vector<8x16xf32> to vector<1x8x16xf32>
    tpu.vector_store %arg4[%c0_31, %c0_32, %c48], %55 {strides = array<i32>} : memref<1x8x128xf32, #tpu.memory_space<vmem>>, vector<1x8x16xf32>,
    %c4 = arith.constant 4 : index
    %c0_33 = arith.constant 0 : index
    %c0_34 = arith.constant 0 : index
    %56 = vector.load %arg1[%c4, %c0_33, %c0_34] : memref<8x8x32xbf16, #tpu.memory_space<vmem>>, vector<1x8x32xbf16>
    %57 = vector.shape_cast %56 : vector<1x8x32xbf16> to vector<8x32xbf16>
    %c4_35 = arith.constant 4 : index
    %c0_36 = arith.constant 0 : index
    %c0_37 = arith.constant 0 : index
    %58 = vector.load %arg2[%c4_35, %c0_36, %c0_37] : memref<8x32x16xbf16, #tpu.memory_space<vmem>>, vector<1x32x16xbf16>
    %59 = vector.shape_cast %58 : vector<1x32x16xbf16> to vector<32x16xbf16>
    %cst_38 = arith.constant dense<0.000000e+00> : vector<8x16xf32>
    %60 = tpu.matmul %57, %59, %cst_38 {dimension_numbers = #tpu.dot_dimension_numbers<[1], [0], [0], [1], [0, 0, 1, 1], [], []>} : vector<8x32xbf16>, vector<32x16xbf16>, vector<8x16xf32> -> vector<8x16xf32>
    %61 = vector.extract_strided_slice %3 {offsets = [4, 0], sizes = [1, 16], strides = [1, 1]} : vector<8x16xf32> to vector<1x16xf32>
    %62 = vector.shape_cast %61 : vector<1x16xf32> to vector<16xf32>
    %63 = vector.shape_cast %62 : vector<16xf32> to vector<1x16xf32>
    %64 = vector.broadcast %63 : vector<1x16xf32> to vector<8x16xf32>
    %65 = arith.addf %60, %64 : vector<8x16xf32>
    %c0_39 = arith.constant 0 : index
    %c0_40 = arith.constant 0 : index
    %c64 = arith.constant 64 : index
    %66 = vector.load %arg4[%c0_39, %c0_40, %c64] : memref<1x8x128xf32, #tpu.memory_space<vmem>>, vector<1x8x16xf32>
    %67 = vector.shape_cast %66 : vector<1x8x16xf32> to vector<8x16xf32>
    %68 = vector.shape_cast %65 : vector<8x16xf32> to vector<1x8x16xf32>
    tpu.vector_store %arg4[%c0_39, %c0_40, %c64], %68 {strides = array<i32>} : memref<1x8x128xf32, #tpu.memory_space<vmem>>, vector<1x8x16xf32>,
    %c5 = arith.constant 5 : index
    %c0_41 = arith.constant 0 : index
    %c0_42 = arith.constant 0 : index
    %69 = vector.load %arg1[%c5, %c0_41, %c0_42] : memref<8x8x32xbf16, #tpu.memory_space<vmem>>, vector<1x8x32xbf16>
    %70 = vector.shape_cast %69 : vector<1x8x32xbf16> to vector<8x32xbf16>
    %c5_43 = arith.constant 5 : index
    %c0_44 = arith.constant 0 : index
    %c0_45 = arith.constant 0 : index
    %71 = vector.load %arg2[%c5_43, %c0_44, %c0_45] : memref<8x32x16xbf16, #tpu.memory_space<vmem>>, vector<1x32x16xbf16>
    %72 = vector.shape_cast %71 : vector<1x32x16xbf16> to vector<32x16xbf16>
    %cst_46 = arith.constant dense<0.000000e+00> : vector<8x16xf32>
    %73 = tpu.matmul %70, %72, %cst_46 {dimension_numbers = #tpu.dot_dimension_numbers<[1], [0], [0], [1], [0, 0, 1, 1], [], []>} : vector<8x32xbf16>, vector<32x16xbf16>, vector<8x16xf32> -> vector<8x16xf32>
    %74 = vector.extract_strided_slice %3 {offsets = [5, 0], sizes = [1, 16], strides = [1, 1]} : vector<8x16xf32> to vector<1x16xf32>
    %75 = vector.shape_cast %74 : vector<1x16xf32> to vector<16xf32>
    %76 = vector.shape_cast %75 : vector<16xf32> to vector<1x16xf32>
    %77 = vector.broadcast %76 : vector<1x16xf32> to vector<8x16xf32>
    %78 = arith.addf %73, %77 : vector<8x16xf32>
    %c0_47 = arith.constant 0 : index
    %c0_48 = arith.constant 0 : index
    %c80 = arith.constant 80 : index
    %79 = vector.load %arg4[%c0_47, %c0_48, %c80] : memref<1x8x128xf32, #tpu.memory_space<vmem>>, vector<1x8x16xf32>
    %80 = vector.shape_cast %79 : vector<1x8x16xf32> to vector<8x16xf32>
    %81 = vector.shape_cast %78 : vector<8x16xf32> to vector<1x8x16xf32>
    tpu.vector_store %arg4[%c0_47, %c0_48, %c80], %81 {strides = array<i32>} : memref<1x8x128xf32, #tpu.memory_space<vmem>>, vector<1x8x16xf32>,
    %c6 = arith.constant 6 : index
    %c0_49 = arith.constant 0 : index
    %c0_50 = arith.constant 0 : index
    %82 = vector.load %arg1[%c6, %c0_49, %c0_50] : memref<8x8x32xbf16, #tpu.memory_space<vmem>>, vector<1x8x32xbf16>
    %83 = vector.shape_cast %82 : vector<1x8x32xbf16> to vector<8x32xbf16>
    %c6_51 = arith.constant 6 : index
    %c0_52 = arith.constant 0 : index
    %c0_53 = arith.constant 0 : index
    %84 = vector.load %arg2[%c6_51, %c0_52, %c0_53] : memref<8x32x16xbf16, #tpu.memory_space<vmem>>, vector<1x32x16xbf16>
    %85 = vector.shape_cast %84 : vector<1x32x16xbf16> to vector<32x16xbf16>
    %cst_54 = arith.constant dense<0.000000e+00> : vector<8x16xf32>
    %86 = tpu.matmul %83, %85, %cst_54 {dimension_numbers = #tpu.dot_dimension_numbers<[1], [0], [0], [1], [0, 0, 1, 1], [], []>} : vector<8x32xbf16>, vector<32x16xbf16>, vector<8x16xf32> -> vector<8x16xf32>
    %87 = vector.extract_strided_slice %3 {offsets = [6, 0], sizes = [1, 16], strides = [1, 1]} : vector<8x16xf32> to vector<1x16xf32>
    %88 = vector.shape_cast %87 : vector<1x16xf32> to vector<16xf32>
    %89 = vector.shape_cast %88 : vector<16xf32> to vector<1x16xf32>
    %90 = vector.broadcast %89 : vector<1x16xf32> to vector<8x16xf32>
    %91 = arith.addf %86, %90 : vector<8x16xf32>
    %c0_55 = arith.constant 0 : index
    %c0_56 = arith.constant 0 : index
    %c96 = arith.constant 96 : index
    %92 = vector.load %arg4[%c0_55, %c0_56, %c96] : memref<1x8x128xf32, #tpu.memory_space<vmem>>, vector<1x8x16xf32>
    %93 = vector.shape_cast %92 : vector<1x8x16xf32> to vector<8x16xf32>
    %94 = vector.shape_cast %91 : vector<8x16xf32> to vector<1x8x16xf32>
    tpu.vector_store %arg4[%c0_55, %c0_56, %c96], %94 {strides = array<i32>} : memref<1x8x128xf32, #tpu.memory_space<vmem>>, vector<1x8x16xf32>,
    %c7 = arith.constant 7 : index
    %c0_57 = arith.constant 0 : index
    %c0_58 = arith.constant 0 : index
    %95 = vector.load %arg1[%c7, %c0_57, %c0_58] : memref<8x8x32xbf16, #tpu.memory_space<vmem>>, vector<1x8x32xbf16>
    %96 = vector.shape_cast %95 : vector<1x8x32xbf16> to vector<8x32xbf16>
    %c7_59 = arith.constant 7 : index
    %c0_60 = arith.constant 0 : index
    %c0_61 = arith.constant 0 : index
    %97 = vector.load %arg2[%c7_59, %c0_60, %c0_61] : memref<8x32x16xbf16, #tpu.memory_space<vmem>>, vector<1x32x16xbf16>
    %98 = vector.shape_cast %97 : vector<1x32x16xbf16> to vector<32x16xbf16>
    %cst_62 = arith.constant dense<0.000000e+00> : vector<8x16xf32>
    %99 = tpu.matmul %96, %98, %cst_62 {dimension_numbers = #tpu.dot_dimension_numbers<[1], [0], [0], [1], [0, 0, 1, 1], [], []>} : vector<8x32xbf16>, vector<32x16xbf16>, vector<8x16xf32> -> vector<8x16xf32>
    %100 = vector.extract_strided_slice %3 {offsets = [7, 0], sizes = [1, 16], strides = [1, 1]} : vector<8x16xf32> to vector<1x16xf32>
    %101 = vector.shape_cast %100 : vector<1x16xf32> to vector<16xf32>
    %102 = vector.shape_cast %101 : vector<16xf32> to vector<1x16xf32>
    %103 = vector.broadcast %102 : vector<1x16xf32> to vector<8x16xf32>
    %104 = arith.addf %99, %103 : vector<8x16xf32>
    %c0_63 = arith.constant 0 : index
    %c0_64 = arith.constant 0 : index
    %c112 = arith.constant 112 : index
    %105 = vector.load %arg4[%c0_63, %c0_64, %c112] : memref<1x8x128xf32, #tpu.memory_space<vmem>>, vector<1x8x16xf32>
    %106 = vector.shape_cast %105 : vector<1x8x16xf32> to vector<8x16xf32>
    %107 = vector.shape_cast %104 : vector<8x16xf32> to vector<1x8x16xf32>
    tpu.vector_store %arg4[%c0_63, %c0_64, %c112], %107 {strides = array<i32>} : memref<1x8x128xf32, #tpu.memory_space<vmem>>, vector<1x8x16xf32>,
    return
  }
  func.func @transform_0(%arg0: i32) -> (i32, i32, i32) {
    %c0_i32 = arith.constant 0 : i32
    %c0_i32_0 = arith.constant 0 : i32
    %c0_i32_1 = arith.constant 0 : i32
    return %arg0, %c0_i32, %c0_i32_0 : i32, i32, i32
  }
  func.func @transform_1(%arg0: i32) -> (i32, i32, i32) {
    %c0_i32 = arith.constant 0 : i32
    %c0_i32_0 = arith.constant 0 : i32
    %c0_i32_1 = arith.constant 0 : i32
    return %arg0, %c0_i32, %c0_i32_0 : i32, i32, i32
  }
  func.func @transform_2(%arg0: i32) -> (i32, i32) {
    %c0_i32 = arith.constant 0 : i32
    %c0_i32_0 = arith.constant 0 : i32
    %c0_i32_1 = arith.constant 0 : i32
    return %c0_i32, %c0_i32_0 : i32, i32
  }
  func.func @transform_3(%arg0: i32) -> (i32, i32, i32) {
    %c0_i32 = arith.constant 0 : i32
    %c0_i32_0 = arith.constant 0 : i32
    %c0_i32_1 = arith.constant 0 : i32
    return %arg0, %c0_i32, %c0_i32_0 : i32, i32, i32
  }
}

</mosaic_0001>

<llo_original>
// kernel: tpu_custom_call.1
$region0: #{tpu_custom_call.1}
  #allocation0 [shape = 'u32[]', space=smem, size = 0x4, offset = 0x4, fixed_abs, tag = 'smem constant byte address 0x4 - core index']
  #allocation1 [shape = 'u32[72,128]{1,0:T(1,128)}', space=vmem, size = 0x9000, scoped, tag = 'internal scratch']
  %s0 = inlined_call_operand.vmem [shape: bf16[8,8,32], index: 0, kind: input, shape index: {}]
  %s1 = inlined_call_operand.vmem [shape: bf16[8,32,16], index: 1, kind: input, shape index: {}]
  %s2 = inlined_call_operand.vmem [shape: f32[8,16], index: 2, kind: input, shape index: {}]
  %s3 = inlined_call_operand.hbm [shape: f32[1,8,128], index: 3, kind: output, shape index: {}]
  %s4 = sld [smem:[#allocation0]]
  $region22: #{tpu_custom_call.1} parent=0
    _
  %s6 = ssub.s32 1, %s4
  %s7 = scalar_select 0, %s6, %s4
  $region1: #{tpu_custom_call.1} parent=0
    #allocation2 [shape = 'u8[4096]{0}', space=vmem, size = 0x1000, scoped, tag = 'output window, operand 0, single buffered']
    #allocation3 [shape = 's32[1]{0}', space=sflag, size = 0x4, scoped, tag = 'scoped memory for tpu_custom_call.1']
    %8 = vsyncpa [#allocation3], 0
    // Predicated region
    $region2: #{tpu_custom_call.1} parent=1 // pred_check
      _
    $region3: #{tpu_custom_call.1} parent=1 // pred_check_branch
      %10 = sbr.rel (0) target = $region5
    $region4: #{tpu_custom_call.1} parent=1 // pred_region
      _
    $region5: #{tpu_custom_call.1} parent=1 // pred_fallthru
      _
    // Predicated region
    $region6: #{tpu_custom_call.1} parent=1 // pred_check
      _
    $region7: #{tpu_custom_call.1} parent=1 // pred_check_branch
      %12 = sbr.rel (0) target = $region9
    $region8: #{tpu_custom_call.1} parent=1 // pred_region
      _
    $region9: #{tpu_custom_call.1} parent=1 // pred_fallthru
      _
    // Predicated region
    $region10: #{tpu_custom_call.1} parent=1 // pred_check
      _
    $region11: #{tpu_custom_call.1} parent=1 // pred_check_branch
      %14 = sbr.rel (0) target = $region13
    $region12: #{tpu_custom_call.1} parent=1 // pred_region
      _
    $region13: #{tpu_custom_call.1} parent=1 // pred_fallthru
      _
    %s16 = smul.u32 0, 8
    %s17 = scalar_lea.vmem %s2, %s16
    %v18 = vld [vmem:[%s17] sm:$0xff]
    %v19 = vld [vmem:[%s0] sm:$0xf]
    %v20 = vld [vmem:[%s1] sm:$0xf]
    %v21 = vld [vmem:[%s1 + $0x4] sm:$0xf]
    %v22 = vld [vmem:[%s1 + $0x8] sm:$0xf]
    %v23 = vld [vmem:[%s1 + $0xc] sm:$0xf]
    %v24 = vperm.slane %v18, 0
    %v29 = vunpack.c.l.b16 %v20
    %v30 = vunpack.c.l.b16 %v21
    %v31 = vunpack.c.l.b16 %v22
    %v32 = vunpack.c.l.b16 %v23
    %v33 = vpack.c.b16 %v30, %v29
    %v34 = vpack.c.b16 %v32, %v31
    %vm37 = vcmask 261120
    %v39 = vsel %vm37, %v19, 0
    %41 = vmatpush.bf16.msra.mxu0 0
    %42 = vmatpush.bf16.msra.mxu0 0
    %43 = vmatpush.bf16.msra.mxu0 0
    %44 = vmatpush.bf16.msra.mxu0 0
    %45 = vmatpush.bf16.msra.mxu0 0
    %46 = vmatpush.bf16.msra.mxu0 0
    %47 = vmatpush.bf16.msra.mxu0 %v34
    %48 = vmatpush.bf16.msra.mxu0 %v33
    %49 = vmatmul.bf16.gmra.mxu0 %v39
    %v50 = vpop.f32.mrf.mxu0
    %v51 = vadd.f32 %v24, %v50
    %v52 = vpop.f32.mrf.mxu0
    %53 = vdwg.mxu0
    %vm54 = vcmask 130048
    %55 = vst.msk [vmem:[#allocation2] sm:$0xff] %vm54, %v51
    %s56 = scalar_lea.vmem %s0, 4
    %v57 = vld [vmem:[%s56] sm:$0xf]
    %s58 = scalar_lea.vmem %s1, 16
    %v59 = vld [vmem:[%s58] sm:$0xf]
    %v60 = vld [vmem:[%s58 + $0x4] sm:$0xf]
    %v61 = vld [vmem:[%s58 + $0x8] sm:$0xf]
    %v62 = vld [vmem:[%s58 + $0xc] sm:$0xf]
    %v63 = vperm.slane %v18, 1
    %v68 = vunpack.c.l.b16 %v59
    %v69 = vunpack.c.l.b16 %v60
    %v70 = vunpack.c.l.b16 %v61
    %v71 = vunpack.c.l.b16 %v62
    %v72 = vpack.c.b16 %v69, %v68
    %v73 = vpack.c.b16 %v71, %v70
    %v77 = vsel %vm37, %v57, 0
    %79 = vmatpush.bf16.msra.mxu0 0
    %80 = vmatpush.bf16.msra.mxu0 0
    %81 = vmatpush.bf16.msra.mxu0 0
    %82 = vmatpush.bf16.msra.mxu0 0
    %83 = vmatpush.bf16.msra.mxu0 0
    %84 = vmatpush.bf16.msra.mxu0 0
    %85 = vmatpush.bf16.msra.mxu0 %v73
    %86 = vmatpush.bf16.msra.mxu0 %v72
    %87 = vmatmul.bf16.gmra.mxu0 %v77
    %v88 = vpop.f32.mrf.mxu0
    %v89 = vadd.f32 %v63, %v88
    %v90 = vpop.f32.mrf.mxu0
    %91 = vdwg.mxu0
    %93 = vrot.lane.b32.xlu0 %v89, 16
    %v94 = vpop.permute.xlu0 %93
    %vm96 = vcmask 261248
    %97 = vst.msk [vmem:[#allocation2] sm:$0xff] %vm96, %v94
    %s98 = scalar_lea.vmem %s0, 8
    %v99 = vld [vmem:[%s98] sm:$0xf]
    %s100 = scalar_lea.vmem %s1, 32
    %v101 = vld [vmem:[%s100] sm:$0xf]
    %v102 = vld [vmem:[%s100 + $0x4] sm:$0xf]
    %v103 = vld [vmem:[%s100 + $0x8] sm:$0xf]
    %v104 = vld [vmem:[%s100 + $0xc] sm:$0xf]
    %v105 = vperm.slane %v18, 2
    %v110 = vunpack.c.l.b16 %v101
    %v111 = vunpack.c.l.b16 %v102
    %v112 = vunpack.c.l.b16 %v103
    %v113 = vunpack.c.l.b16 %v104
    %v114 = vpack.c.b16 %v111, %v110
    %v115 = vpack.c.b16 %v113, %v112
    %v119 = vsel %vm37, %v99, 0
    %121 = vmatpush.bf16.msra.mxu0 0
    %122 = vmatpush.bf16.msra.mxu0 0
    %123 = vmatpush.bf16.msra.mxu0 0
    %124 = vmatpush.bf16.msra.mxu0 0
    %125 = vmatpush.bf16.msra.mxu0 0
    %126 = vmatpush.bf16.msra.mxu0 0
    %127 = vmatpush.bf16.msra.mxu0 %v115
    %128 = vmatpush.bf16.msra.mxu0 %v114
    %129 = vmatmul.bf16.gmra.mxu0 %v119
    %v130 = vpop.f32.mrf.mxu0
    %v131 = vadd.f32 %v105, %v130
    %v132 = vpop.f32.mrf.mxu0
    %133 = vdwg.mxu0
    %135 = vrot.lane.b32.xlu0 %v131, 32
    %v136 = vpop.permute.xlu0 %135
    %vm138 = vcmask 392448
    %139 = vst.msk [vmem:[#allocation2] sm:$0xff] %vm138, %v136
    %s140 = scalar_lea.vmem %s0, 12
    %v141 = vld [vmem:[%s140] sm:$0xf]
    %s142 = scalar_lea.vmem %s1, 48
    %v143 = vld [vmem:[%s142] sm:$0xf]
    %v144 = vld [vmem:[%s142 + $0x4] sm:$0xf]
    %v145 = vld [vmem:[%s142 + $0x8] sm:$0xf]
    %v146 = vld [vmem:[%s142 + $0xc] sm:$0xf]
    %v147 = vperm.slane %v18, 3
    %v152 = vunpack.c.l.b16 %v143
    %v153 = vunpack.c.l.b16 %v144
    %v154 = vunpack.c.l.b16 %v145
    %v155 = vunpack.c.l.b16 %v146
    %v156 = vpack.c.b16 %v153, %v152
    %v157 = vpack.c.b16 %v155, %v154
    %v161 = vsel %vm37, %v141, 0
    %163 = vmatpush.bf16.msra.mxu0 0
    %164 = vmatpush.bf16.msra.mxu0 0
    %165 = vmatpush.bf16.msra.mxu0 0
    %166 = vmatpush.bf16.msra.mxu0 0
    %167 = vmatpush.bf16.msra.mxu0 0
    %168 = vmatpush.bf16.msra.mxu0 0
    %169 = vmatpush.bf16.msra.mxu0 %v157
    %170 = vmatpush.bf16.msra.mxu0 %v156
    %171 = vmatmul.bf16.gmra.mxu0 %v161
    %v172 = vpop.f32.mrf.mxu0
    %v173 = vadd.f32 %v147, %v172
    %v174 = vpop.f32.mrf.mxu0
    %175 = vdwg.mxu0
    %177 = vrot.lane.b32.xlu0 %v173, 48
    %v178 = vpop.permute.xlu0 %177
    %vm180 = vcmask 523648
    %181 = vst.msk [vmem:[#allocation2] sm:$0xff] %vm180, %v178
    %s182 = scalar_lea.vmem %s0, 16
    %v183 = vld [vmem:[%s182] sm:$0xf]
    %s184 = scalar_lea.vmem %s1, 64
    %v185 = vld [vmem:[%s184] sm:$0xf]
    %v186 = vld [vmem:[%s184 + $0x4] sm:$0xf]
    %v187 = vld [vmem:[%s184 + $0x8] sm:$0xf]
    %v188 = vld [vmem:[%s184 + $0xc] sm:$0xf]
    %v189 = vperm.slane %v18, 4
    %v194 = vunpack.c.l.b16 %v185
    %v195 = vunpack.c.l.b16 %v186
    %v196 = vunpack.c.l.b16 %v187
    %v197 = vunpack.c.l.b16 %v188
    %v198 = vpack.c.b16 %v195, %v194
    %v199 = vpack.c.b16 %v197, %v196
    %v203 = vsel %vm37, %v183, 0
    %205 = vmatpush.bf16.msra.mxu0 0
    %206 = vmatpush.bf16.msra.mxu0 0
    %207 = vmatpush.bf16.msra.mxu0 0
    %208 = vmatpush.bf16.msra.mxu0 0
    %209 = vmatpush.bf16.msra.mxu0 0
    %210 = vmatpush.bf16.msra.mxu0 0
    %211 = vmatpush.bf16.msra.mxu0 %v199
    %212 = vmatpush.bf16.msra.mxu0 %v198
    %213 = vmatmul.bf16.gmra.mxu0 %v203
    %v214 = vpop.f32.mrf.mxu0
    %v215 = vadd.f32 %v189, %v214
    %v216 = vpop.f32.mrf.mxu0
    %217 = vdwg.mxu0
    %219 = vrot.lane.b32.xlu0 %v215, 64
    %v220 = vpop.permute.xlu0 %219
    %vm222 = vcmask 654848
    %223 = vst.msk [vmem:[#allocation2] sm:$0xff] %vm222, %v220
    %s224 = scalar_lea.vmem %s0, 20
    %v225 = vld [vmem:[%s224] sm:$0xf]
    %s226 = scalar_lea.vmem %s1, 80
    %v227 = vld [vmem:[%s226] sm:$0xf]
    %v228 = vld [vmem:[%s226 + $0x4] sm:$0xf]
    %v229 = vld [vmem:[%s226 + $0x8] sm:$0xf]
    %v230 = vld [vmem:[%s226 + $0xc] sm:$0xf]
    %v231 = vperm.slane %v18, 5
    %v236 = vunpack.c.l.b16 %v227
    %v237 = vunpack.c.l.b16 %v228
    %v238 = vunpack.c.l.b16 %v229
    %v239 = vunpack.c.l.b16 %v230
    %v240 = vpack.c.b16 %v237, %v236
    %v241 = vpack.c.b16 %v239, %v238
    %v245 = vsel %vm37, %v225, 0
    %247 = vmatpush.bf16.msra.mxu0 0
    %248 = vmatpush.bf16.msra.mxu0 0
    %249 = vmatpush.bf16.msra.mxu0 0
    %250 = vmatpush.bf16.msra.mxu0 0
    %251 = vmatpush.bf16.msra.mxu0 0
    %252 = vmatpush.bf16.msra.mxu0 0
    %253 = vmatpush.bf16.msra.mxu0 %v241
    %254 = vmatpush.bf16.msra.mxu0 %v240
    %255 = vmatmul.bf16.gmra.mxu0 %v245
    %v256 = vpop.f32.mrf.mxu0
    %v257 = vadd.f32 %v231, %v256
    %v258 = vpop.f32.mrf.mxu0
    %259 = vdwg.mxu0
    %261 = vrot.lane.b32.xlu0 %v257, 80
    %v262 = vpop.permute.xlu0 %261
    %vm264 = vcmask 786048
    %265 = vst.msk [vmem:[#allocation2] sm:$0xff] %vm264, %v262
    %s266 = scalar_lea.vmem %s0, 24
    %v267 = vld [vmem:[%s266] sm:$0xf]
    %s268 = scalar_lea.vmem %s1, 96
    %v269 = vld [vmem:[%s268] sm:$0xf]
    %v270 = vld [vmem:[%s268 + $0x4] sm:$0xf]
    %v271 = vld [vmem:[%s268 + $0x8] sm:$0xf]
    %v272 = vld [vmem:[%s268 + $0xc] sm:$0xf]
    %v273 = vperm.slane %v18, 6
    %v278 = vunpack.c.l.b16 %v269
    %v279 = vunpack.c.l.b16 %v270
    %v280 = vunpack.c.l.b16 %v271
    %v281 = vunpack.c.l.b16 %v272
    %v282 = vpack.c.b16 %v279, %v278
    %v283 = vpack.c.b16 %v281, %v280
    %v287 = vsel %vm37, %v267, 0
    %289 = vmatpush.bf16.msra.mxu0 0
    %290 = vmatpush.bf16.msra.mxu0 0
    %291 = vmatpush.bf16.msra.mxu0 0
    %292 = vmatpush.bf16.msra.mxu0 0
    %293 = vmatpush.bf16.msra.mxu0 0
    %294 = vmatpush.bf16.msra.mxu0 0
    %295 = vmatpush.bf16.msra.mxu0 %v283
    %296 = vmatpush.bf16.msra.mxu0 %v282
    %297 = vmatmul.bf16.gmra.mxu0 %v287
    %v298 = vpop.f32.mrf.mxu0
    %v299 = vadd.f32 %v273, %v298
    %v300 = vpop.f32.mrf.mxu0
    %301 = vdwg.mxu0
    %303 = vrot.lane.b32.xlu0 %v299, 96
    %v304 = vpop.permute.xlu0 %303
    %vm306 = vcmask 917248
    %307 = vst.msk [vmem:[#allocation2] sm:$0xff] %vm306, %v304
    %s308 = scalar_lea.vmem %s0, 28
    %v309 = vld [vmem:[%s308] sm:$0xf]
    %s310 = scalar_lea.vmem %s1, 112
    %v311 = vld [vmem:[%s310] sm:$0xf]
    %v312 = vld [vmem:[%s310 + $0x4] sm:$0xf]
    %v313 = vld [vmem:[%s310 + $0x8] sm:$0xf]
    %v314 = vld [vmem:[%s310 + $0xc] sm:$0xf]
    %v315 = vperm.slane %v18, 7
    %v320 = vunpack.c.l.b16 %v311
    %v321 = vunpack.c.l.b16 %v312
    %v322 = vunpack.c.l.b16 %v313
    %v323 = vunpack.c.l.b16 %v314
    %v324 = vpack.c.b16 %v321, %v320
    %v325 = vpack.c.b16 %v323, %v322
    %v329 = vsel %vm37, %v309, 0
    %331 = vmatpush.bf16.msra.mxu0 0
    %332 = vmatpush.bf16.msra.mxu0 0
    %333 = vmatpush.bf16.msra.mxu0 0
    %334 = vmatpush.bf16.msra.mxu0 0
    %335 = vmatpush.bf16.msra.mxu0 0
    %336 = vmatpush.bf16.msra.mxu0 0
    %337 = vmatpush.bf16.msra.mxu0 %v325
    %338 = vmatpush.bf16.msra.mxu0 %v324
    %339 = vmatmul.bf16.gmra.mxu0 %v329
    %v340 = vpop.f32.mrf.mxu0
    %v341 = vadd.f32 %v315, %v340
    %v342 = vpop.f32.mrf.mxu0
    %343 = vdwg.mxu0
    %345 = vrot.lane.b32.xlu0 %v341, 112
    %v346 = vpop.permute.xlu0 %345
    %vm348 = vcmask 1048448
    %349 = vst.msk [vmem:[#allocation2] sm:$0xff] %vm348, %v346
    // Predicated region
    $region14: #{tpu_custom_call.1} parent=1 // pred_check
      _
    $region15: #{tpu_custom_call.1} parent=1 // pred_check_branch
      %351 = sbr.rel (0) target = $region17
    $region16: #{tpu_custom_call.1} parent=1 // pred_region
      %353 = vsyncadd [#allocation3], 0
      %s355 = sshll.u32 [#allocation2], 4
      %s356 = int_to_ptr.vmem [resolvable:$true] %s355
      %s357 = sshll.u32 %s3, 4
      %s358 = int_to_ptr.hbm [resolvable:$true] %s357
      %360 = dma.vmem_to_hbm [thread:$0]  %s356, 128, %s358, [#allocation3]
    $region17: #{tpu_custom_call.1} parent=1 // pred_fallthru
      _
    // Predicated region
    $region18: #{tpu_custom_call.1} parent=1 // pred_check
      _
    $region19: #{tpu_custom_call.1} parent=1 // pred_check_branch
      %362 = sbr.rel (0) target = $region21
    $region20: #{tpu_custom_call.1} parent=1 // pred_region
      %364 = dma.done [#allocation3], 128
    $region21: #{tpu_custom_call.1} parent=1 // pred_fallthru
      _
    %365 = vsyncpa [#allocation3], 1

</llo_original>
